<compile_context>
chip_gen: v6e
topology: v6e:2x2x1
jax: 0.10.0
libtpu: 0.0.40
codegen_flags: <defaults>
</compile_context>

<pallas_src>
import jax
import jax.numpy as jnp
from jax import lax
from jax.experimental import pallas as pl
from jax.experimental.pallas import tpu as pltpu

EPS = 1e-12  # F.normalize default eps


def _l2_normalize(x):
    # F.normalize(x, dim=1): x / max(||x||_2, eps)  ==  x * rsqrt(max(ss, eps^2))
    ss = jnp.sum(x * x, axis=-1, keepdims=True)
    return x * lax.rsqrt(jnp.maximum(ss, EPS * EPS))


def _fine_residual(y, w_ref, b_ref):
    # residual block y + relu(y @ W + b); bf16 MXU math, f32 accumulation.
    return y + jnp.maximum(
        jnp.dot(y.astype(jnp.bfloat16), w_ref[...],
                preferred_element_type=jnp.float32) + b_ref[...], 0.0)


def _sim_and_store(doc, cnt, lbl, sims_ref):
    """Cosine similarities -> lane-dense [2B, n_pad] store (n_pad % 128 == 0)."""
    f32, bf16 = jnp.float32, jnp.bfloat16
    B, D = lbl.shape
    n_pad = sims_ref.shape[1]

    # cnt_rep = F.normalize(cnt_rep + lbl_rep); rows are then unit-norm so the
    # second normalize inside similarity() is a no-op and is skipped.
    cnt_n = _l2_normalize(cnt + lbl)
    doc_n = _l2_normalize(doc)
    lbl_n = _l2_normalize(lbl)

    # Lane-dense output: zero-pad the label rows (= result columns) up to
    # n_pad so both stores below are full-width unmasked vst; the wrapper
    # slices columns [:B] back out.
    if n_pad > B:
        lbl_n = jnp.concatenate(
            [lbl_n, jnp.zeros((n_pad - B, D), f32)], axis=0)
    lbl_b = lbl_n.astype(bf16)

    # bf16 x bf16 single-pass MXU matmuls (f32 accumulate). Contracting dim 1
    # of both operands; the one-time [n_pad, D] relayout of lbl_b is cheap.
    dn = (((1,), (1,)), ((), ()))
    sims_ref[:B, :] = lax.dot_general(doc_n.astype(bf16), lbl_b, dn,
                                      preferred_element_type=f32)
    sims_ref[B:, :] = lax.dot_general(cnt_n.astype(bf16), lbl_b, dn,
                                      preferred_element_type=f32)


def siamesexml_kernel_fused(xyc_ref, wemb_ref, wfine_ref, bfine_ref, sims_ref):
    """v6e/v7x path: W_fd|W_fl packed as a [D, 2D] RHS so both fine transforms
    go through the 256-wide MXU in one pass; column slices are vreg-aligned."""
    f32 = jnp.float32
    B = sims_ref.shape[0] // 2
    D = wemb_ref.shape[1]

    # shared coarse encoder: single MXU pass over the stacked [doc; cnt; lbl]
    coarse = jnp.dot(xyc_ref[...], wemb_ref[...],
                     preferred_element_type=f32)                      # [3B, D]

    act = jnp.maximum(
        jnp.dot(coarse.astype(jnp.bfloat16), wfine_ref[...],
                preferred_element_type=f32) + bfine_ref[...], 0.0)    # [3B, 2D]

    dc = coarse[:2 * B] + act[:2 * B, :D]     # doc + cnt rows: W_fd columns
    lbl = coarse[2 * B:] + act[2 * B:, D:]    # lbl rows:       W_fl columns
    _sim_and_store(dc[:B], dc[B:], lbl, sims_ref)


def siamesexml_kernel_split(xyc_ref, wemb_ref, wfd_ref, bfd_ref,
                            wfl_ref, bfl_ref, sims_ref):
    """v5e/v4 path: two N=128 fine matmuls exactly fill the 128-wide MXU;
    fusing them to N=256 there would double real MXU work."""
    f32 = jnp.float32
    B = sims_ref.shape[0] // 2

    coarse = jnp.dot(xyc_ref[...], wemb_ref[...],
                     preferred_element_type=f32)                      # [3B, D]
    dc = _fine_residual(coarse[:2 * B], wfd_ref, bfd_ref)             # doc+cnt
    lbl = _fine_residual(coarse[2 * B:], wfl_ref, bfl_ref)            # lbl
    _sim_and_store(dc[:B], dc[B:], lbl, sims_ref)


def siamesexml_forward(x, yx, cx, w_emb, w_fd, b_fd, w_fl, b_fl,
                       *, fuse_fine=None):
    B, V = x.shape
    D = w_emb.shape[1]
    bf16 = jnp.bfloat16

    if fuse_fine is None:
        # 256-wide MXU (v6e / v7x): pack W_fd|W_fl so the second fine transform
        # rides along for free. 128-wide MXU (v5e / v4): keep them separate.
        kind = jax.devices()[0].device_kind.lower()
        fuse_fine = any(tag in kind for tag in ("v6", "v7", "7x"))

    n_pad = ((B + 127) // 128) * 128           # lane-dense sims output width

    # Stack [doc; context; label] -> one coarse MXU pass against shared W_emb.
    # Rows: [0:B]=doc, [B:2B]=cnt (share fine-doc weights), [2B:3B]=lbl.
    # TODO(synk): at production V drop this wrapper-side concat+cast (extra
    # un-hidden HBM traffic): pass x/cx/yx separately with a V-tiled grid
    # ("arbitrary" V reduction into a VMEM f32 accumulator, batch rows
    # "parallel" so v7x's 2nd TensorCore is used), cast to bf16 in-kernel, and
    # re-size the V tile for v7x's 64 MiB VMEM instead of a v5e/v6e budget.
    xyc = jnp.concatenate([x, cx, yx], axis=0).astype(bf16)           # [3B, V]

    full = lambda shape: pl.BlockSpec(shape, lambda: (0,) * len(shape))
    out_shape = jax.ShapeDtypeStruct((2 * B, n_pad), jnp.float32)
    cparams = pltpu.CompilerParams(vmem_limit_bytes=8 << 20)

    if fuse_fine:
        w_fine = jnp.concatenate([w_fd, w_fl], axis=1).astype(bf16)   # [D, 2D]
        b_fine = jnp.concatenate([b_fd, b_fl], axis=1)                # [1, 2D]
        sims = pl.pallas_call(
            siamesexml_kernel_fused,
            out_shape=out_shape,
            grid=(),  # toy problem: whole working set (<1 MiB) fits in VMEM
            in_specs=[full((3 * B, V)), full((V, D)),
                      full((D, 2 * D)), full((1, 2 * D))],
            out_specs=full((2 * B, n_pad)),
            compiler_params=cparams,
        )(xyc, w_emb.astype(bf16), w_fine, b_fine)
    else:
        sims = pl.pallas_call(
            siamesexml_kernel_split,
            out_shape=out_shape,
            grid=(),
            in_specs=[full((3 * B, V)), full((V, D)),
                      full((D, D)), full((1, D)),
                      full((D, D)), full((1, D))],
            out_specs=full((2 * B, n_pad)),
            compiler_params=cparams,
        )(xyc, w_emb.astype(bf16), w_fd.astype(bf16), b_fd,
          w_fl.astype(bf16), b_fl)

    sims = sims[:, :B]                          # drop lane padding
    return sims[:B], sims[B:]


def siamesexml_reference(x, yx, cx, w_emb, w_fd, b_fd, w_fl, b_fl):
    """Pure-JAX f32 reference mirroring the PyTorch forward."""
    def fine(y, w, b):
        return y + jnp.maximum(y @ w + b, 0.0)

    def l2n(v):
        n = jnp.sqrt(jnp.sum(v * v, axis=-1, keepdims=True))
        return v / jnp.maximum(n, EPS)

    doc = fine(x @ w_emb, w_fd, b_fd)
    lbl = fine(yx @ w_emb, w_fl, b_fl)
    cnt = fine(cx @ w_emb, w_fd, b_fd)
    cnt = l2n(cnt + lbl)
    doc_n = l2n(doc)
    lbl_n = l2n(lbl)
    cnt_n = l2n(cnt)
    return doc_n @ lbl_n.T, cnt_n @ lbl_n.T


if __name__ == "__main__":
    B = 16     # batch (== number of sampled labels); multiple of 16 so every
               # f32 slice lands on 8-row and every bf16 slice on 16-row tiles
    V = 256    # vocabulary dims (dense feature width)
    D = 128    # embedding / representation dims

    key = jax.random.PRNGKey(0)
    ks = jax.random.split(key, 8)

    x  = jax.random.uniform(ks[0], (B, V), jnp.float32)
    yx = jax.random.uniform(ks[1], (B, V), jnp.float32)
    cx = jax.random.uniform(ks[2], (B, V), jnp.float32)

    # deterministic parameter init (shapes from module semantics)
    w_emb = jax.random.normal(ks[3], (V, D), jnp.float32) * 0.05  # shared coarse
    w_fd  = jax.random.normal(ks[4], (D, D), jnp.float32) * 0.05  # fine doc
    b_fd  = jax.random.normal(ks[5], (1, D), jnp.float32) * 0.01
    w_fl  = jax.random.normal(ks[6], (D, D), jnp.float32) * 0.05  # fine label
    b_fl  = jax.random.normal(ks[7], (1, D), jnp.float32) * 0.01

    # Reference on the same bf16-quantized operands the kernel sees (all MXU
    # math is bf16 with f32 accumulation, so tolerances are relaxed).
    q = lambda a: a.astype(jnp.bfloat16).astype(jnp.float32)
    ref1, ref2 = siamesexml_reference(q(x), q(yx), q(cx), q(w_emb),
                                      q(w_fd), b_fd, q(w_fl), b_fl)

    # Exercise both MXU-width variants (auto-selected from device_kind when
    # fuse_fine is not forced).
    for fuse in (True, False):
        sim1, sim2 = siamesexml_forward(x, yx, cx, w_emb, w_fd, b_fd,
                                        w_fl, b_fl, fuse_fine=fuse)
        jax.block_until_ready((sim1, sim2))
        assert sim1.shape == (B, B) and sim2.shape == (B, B)
        assert jnp.allclose(sim1, ref1, atol=3e-2, rtol=3e-2), f"sim1 fuse={fuse}"
        assert jnp.allclose(sim2, ref2, atol=3e-2, rtol=3e-2), f"sim2 fuse={fuse}"

    print("KERNEL_OK")
</pallas_src>

<mosaic_0001>
module attributes {stable_mosaic.version = 11 : i64} {
  func.func @siamesexml_kernel_fused(%arg0: memref<48x256xbf16, #tpu.memory_space<vmem>>, %arg1: memref<256x128xbf16, #tpu.memory_space<vmem>>, %arg2: memref<128x256xbf16, #tpu.memory_space<vmem>>, %arg3: memref<1x256xf32, #tpu.memory_space<vmem>>, %arg4: memref<32x128xf32, #tpu.memory_space<vmem>>) attributes {dimension_semantics = [], scalar_prefetch = 0 : i64, scratch_operands = 0 : i64, tpu.core_type = #tpu.core_type<tc>} {
    %c0 = arith.constant 0 : index
    %c0_0 = arith.constant 0 : index
    %0 = vector.load %arg0[%c0, %c0_0] : memref<48x256xbf16, #tpu.memory_space<vmem>>, vector<48x256xbf16>
    %c0_1 = arith.constant 0 : index
    %c0_2 = arith.constant 0 : index
    %1 = vector.load %arg1[%c0_1, %c0_2] : memref<256x128xbf16, #tpu.memory_space<vmem>>, vector<256x128xbf16>
    %cst = arith.constant dense<0.000000e+00> : vector<48x128xf32>
    %2 = tpu.matmul %0, %1, %cst {dimension_numbers = #tpu.dot_dimension_numbers<[1], [0], [0], [1], [0, 0, 1, 1], [], []>} : vector<48x256xbf16>, vector<256x128xbf16>, vector<48x128xf32> -> vector<48x128xf32>
    %3 = arith.truncf %2 : vector<48x128xf32> to vector<48x128xbf16>
    %c0_3 = arith.constant 0 : index
    %c0_4 = arith.constant 0 : index
    %4 = vector.load %arg2[%c0_3, %c0_4] : memref<128x256xbf16, #tpu.memory_space<vmem>>, vector<128x256xbf16>
    %cst_5 = arith.constant dense<0.000000e+00> : vector<48x256xf32>
    %5 = tpu.matmul %3, %4, %cst_5 {dimension_numbers = #tpu.dot_dimension_numbers<[1], [0], [0], [1], [0, 0, 1, 1], [], []>} : vector<48x128xbf16>, vector<128x256xbf16>, vector<48x256xf32> -> vector<48x256xf32>
    %c0_6 = arith.constant 0 : index
    %c0_7 = arith.constant 0 : index
    %6 = vector.load %arg3[%c0_6, %c0_7] : memref<1x256xf32, #tpu.memory_space<vmem>>, vector<1x256xf32>
    %7 = vector.broadcast %6 : vector<1x256xf32> to vector<48x256xf32>
    %8 = arith.addf %5, %7 : vector<48x256xf32>
    %cst_8 = arith.constant 0.000000e+00 : f32
    %9 = vector.broadcast %cst_8 : f32 to vector<48x256xf32>
    %10 = arith.maximumf %8, %9 : vector<48x256xf32>
    %11 = vector.extract_strided_slice %2 {offsets = [0, 0], sizes = [32, 128], strides = [1, 1]} : vector<48x128xf32> to vector<32x128xf32>
    %12 = vector.extract_strided_slice %10 {offsets = [0, 0], sizes = [32, 128], strides = [1, 1]} : vector<48x256xf32> to vector<32x128xf32>
    %13 = arith.addf %11, %12 : vector<32x128xf32>
    %14 = vector.extract_strided_slice %2 {offsets = [32, 0], sizes = [16, 128], strides = [1, 1]} : vector<48x128xf32> to vector<16x128xf32>
    %15 = vector.extract_strided_slice %10 {offsets = [32, 128], sizes = [16, 128], strides = [1, 1]} : vector<48x256xf32> to vector<16x128xf32>
    %16 = arith.addf %14, %15 : vector<16x128xf32>
    %17 = vector.extract_strided_slice %13 {offsets = [0, 0], sizes = [16, 128], strides = [1, 1]} : vector<32x128xf32> to vector<16x128xf32>
    %18 = vector.extract_strided_slice %13 {offsets = [16, 0], sizes = [16, 128], strides = [1, 1]} : vector<32x128xf32> to vector<16x128xf32>
    %19 = arith.addf %18, %16 : vector<16x128xf32>
    %20 = arith.mulf %19, %19 : vector<16x128xf32>
    %cst_9 = arith.constant dense<0.000000e+00> : vector<16xf32>
    %21 = vector.multi_reduction <add>, %20, %cst_9 [1] : vector<16x128xf32> to vector<16xf32>
    %22 = vector.shape_cast %21 : vector<16xf32> to vector<16x1xf32>
    %cst_10 = arith.constant 1.000000e-24 : f32
    %23 = vector.broadcast %cst_10 : f32 to vector<16x1xf32>
    %24 = arith.maximumf %22, %23 : vector<16x1xf32>
    %25 = math.rsqrt %24 : vector<16x1xf32>
    %26 = vector.broadcast %25 : vector<16x1xf32> to vector<16x128xf32>
    %27 = arith.mulf %19, %26 : vector<16x128xf32>
    %28 = arith.mulf %17, %17 : vector<16x128xf32>
    %cst_11 = arith.constant dense<0.000000e+00> : vector<16xf32>
    %29 = vector.multi_reduction <add>, %28, %cst_11 [1] : vector<16x128xf32> to vector<16xf32>
    %30 = vector.shape_cast %29 : vector<16xf32> to vector<16x1xf32>
    %cst_12 = arith.constant 1.000000e-24 : f32
    %31 = vector.broadcast %cst_12 : f32 to vector<16x1xf32>
    %32 = arith.maximumf %30, %31 : vector<16x1xf32>
    %33 = math.rsqrt %32 : vector<16x1xf32>
    %34 = vector.broadcast %33 : vector<16x1xf32> to vector<16x128xf32>
    %35 = arith.mulf %17, %34 : vector<16x128xf32>
    %36 = arith.mulf %16, %16 : vector<16x128xf32>
    %cst_13 = arith.constant dense<0.000000e+00> : vector<16xf32>
    %37 = vector.multi_reduction <add>, %36, %cst_13 [1] : vector<16x128xf32> to vector<16xf32>
    %38 = vector.shape_cast %37 : vector<16xf32> to vector<16x1xf32>
    %cst_14 = arith.constant 1.000000e-24 : f32
    %39 = vector.broadcast %cst_14 : f32 to vector<16x1xf32>
    %40 = arith.maximumf %38, %39 : vector<16x1xf32>
    %41 = math.rsqrt %40 : vector<16x1xf32>
    %42 = vector.broadcast %41 : vector<16x1xf32> to vector<16x128xf32>
    %43 = arith.mulf %16, %42 : vector<16x128xf32>
    %cst_15 = arith.constant 0.000000e+00 : f32
    %44 = vector.broadcast %cst_15 : f32 to vector<112x128xf32>
    %45 = tpu.concatenate %43, %44 in 0 : vector<16x128xf32>, vector<112x128xf32> -> vector<128x128xf32>
    %46 = arith.truncf %45 : vector<128x128xf32> to vector<128x128xbf16>
    %47 = arith.truncf %35 : vector<16x128xf32> to vector<16x128xbf16>
    %cst_16 = arith.constant dense<0.000000e+00> : vector<16x128xf32>
    %48 = tpu.matmul %47, %46, %cst_16 {dimension_numbers = #tpu.dot_dimension_numbers<[1], [1], [0], [0], [0, 0, 1, 0], [], []>} : vector<16x128xbf16>, vector<128x128xbf16>, vector<16x128xf32> -> vector<16x128xf32>
    %c0_17 = arith.constant 0 : index
    %c0_18 = arith.constant 0 : index
    %49 = vector.load %arg4[%c0_17, %c0_18] : memref<32x128xf32, #tpu.memory_space<vmem>>, vector<16x128xf32>
    tpu.vector_store %arg4[%c0_17, %c0_18], %48 {strides = array<i32>} : memref<32x128xf32, #tpu.memory_space<vmem>>, vector<16x128xf32>,
    %50 = arith.truncf %27 : vector<16x128xf32> to vector<16x128xbf16>
    %cst_19 = arith.constant dense<0.000000e+00> : vector<16x128xf32>
    %51 = tpu.matmul %50, %46, %cst_19 {dimension_numbers = #tpu.dot_dimension_numbers<[1], [1], [0], [0], [0, 0, 1, 0], [], []>} : vector<16x128xbf16>, vector<128x128xbf16>, vector<16x128xf32> -> vector<16x128xf32>
    %c16 = arith.constant 16 : index
    %c0_20 = arith.constant 0 : index
    %52 = vector.load %arg4[%c16, %c0_20] : memref<32x128xf32, #tpu.memory_space<vmem>>, vector<16x128xf32>
    tpu.vector_store %arg4[%c16, %c0_20], %51 {strides = array<i32>} : memref<32x128xf32, #tpu.memory_space<vmem>>, vector<16x128xf32>,
    return
  }
}

</mosaic_0001>

<llo_original>
// kernel: tpu_custom_call.1
$region0: #{tpu_custom_call.1}
  #allocation0 [shape = 'u32[]', space=smem, size = 0x4, offset = 0x4, fixed_abs, tag = 'smem constant byte address 0x4 - core index']
  #allocation1 [shape = 'u32[144,128]{1,0:T(1,128)}', space=vmem, size = 0x12000, scoped, tag = 'internal scratch']
  %s0 = inlined_call_operand.hbm [shape: bf16[48,256], index: 0, kind: input, shape index: {}]
  %s1 = inlined_call_operand.hbm [shape: bf16[256,128], index: 1, kind: input, shape index: {}]
  %s2 = inlined_call_operand.hbm [shape: bf16[128,256], index: 2, kind: input, shape index: {}]
  %s3 = inlined_call_operand.vmem [shape: f32[1,256], index: 3, kind: input, shape index: {}]
  %s4 = inlined_call_operand.hbm [shape: f32[32,128], index: 4, kind: output, shape index: {}]
  %s5 = sld [smem:[#allocation0]]
  $region38: #{tpu_custom_call.1} parent=0
    _
  %s7 = ssub.s32 1, %s5
  %s8 = scalar_select 0, %s7, %s5
  $region1: #{tpu_custom_call.1} parent=0
    #allocation2 [shape = 'u8[24576]{0}', space=vmem, size = 0x6000, scoped, tag = 'input window, operand 0, single buffered']
    #allocation3 [shape = 's32[1]{0}', space=sflag, size = 0x4, scoped, tag = 'scoped memory for tpu_custom_call.1']
    #allocation4 [shape = 's32[1]{0}', space=sflag, size = 0x4, scoped, tag = 'scoped memory for tpu_custom_call.1']
    #allocation5 [shape = 'u8[65536]{0}', space=vmem, size = 0x10000, scoped, tag = 'input window, operand 1, single buffered']
    #allocation6 [shape = 's32[1]{0}', space=sflag, size = 0x4, scoped, tag = 'scoped memory for tpu_custom_call.1']
    #allocation7 [shape = 'u8[65536]{0}', space=vmem, size = 0x10000, scoped, tag = 'input window, operand 2, single buffered']
    #allocation8 [shape = 'u8[16384]{0}', space=vmem, size = 0x4000, scoped, tag = 'output window, operand 0, single buffered']
    %9 = vsyncpa [#allocation3], 0
    %10 = vsyncpa [#allocation6], 0
    %11 = vsyncpa [#allocation4], 0
    // Predicated region
    $region2: #{tpu_custom_call.1} parent=1 // pred_check
      _
    $region3: #{tpu_custom_call.1} parent=1 // pred_check_branch
      %13 = sbr.rel (0) target = $region5
    $region4: #{tpu_custom_call.1} parent=1 // pred_region
      %s15 = ssub.s32 768, 768
      %16 = vsyncadd [#allocation3], %s15
      %s17 = sshll.u32 [#allocation2], 4
      %s18 = int_to_ptr.vmem [resolvable:$true] %s17
      %23 = dma.hbm_to_vmem [thread:$0]  %s0, 768, %s18, [#allocation3], 128, 128, 8
    $region5: #{tpu_custom_call.1} parent=1 // pred_fallthru
      _
    // Predicated region
    $region6: #{tpu_custom_call.1} parent=1 // pred_check
      _
    $region7: #{tpu_custom_call.1} parent=1 // pred_check_branch
      %25 = sbr.rel (0) target = $region9
    $region8: #{tpu_custom_call.1} parent=1 // pred_region
      %s27 = ssub.s32 2048, 2048
      %28 = vsyncadd [#allocation6], %s27
      %s29 = sshll.u32 [#allocation5], 4
      %s30 = int_to_ptr.vmem [resolvable:$true] %s29
      %35 = dma.hbm_to_vmem [thread:$0]  %s1, 2048, %s30, [#allocation6], 64, 64, 4
    $region9: #{tpu_custom_call.1} parent=1 // pred_fallthru
      _
    // Predicated region
    $region10: #{tpu_custom_call.1} parent=1 // pred_check
      _
    $region11: #{tpu_custom_call.1} parent=1 // pred_check_branch
      %37 = sbr.rel (0) target = $region13
    $region12: #{tpu_custom_call.1} parent=1 // pred_region
      %s39 = ssub.s32 2048, 2048
      %40 = vsyncadd [#allocation6], %s39
      %s41 = sshll.u32 [#allocation7], 4
      %s42 = int_to_ptr.vmem [resolvable:$true] %s41
      %47 = dma.hbm_to_vmem [thread:$0]  %s2, 2048, %s42, [#allocation6], 128, 128, 8
    $region13: #{tpu_custom_call.1} parent=1 // pred_fallthru
      _
    // Predicated region
    $region14: #{tpu_custom_call.1} parent=1 // pred_check
      _
    $region15: #{tpu_custom_call.1} parent=1 // pred_check_branch
      %49 = sbr.rel (0) target = $region17
    $region16: #{tpu_custom_call.1} parent=1 // pred_region
      _
    $region17: #{tpu_custom_call.1} parent=1 // pred_fallthru
      _
    // Predicated region
    $region18: #{tpu_custom_call.1} parent=1 // pred_check
      _
    $region19: #{tpu_custom_call.1} parent=1 // pred_check_branch
      %51 = sbr.rel (0) target = $region21
    $region20: #{tpu_custom_call.1} parent=1 // pred_region
      %52 = dma.done [#allocation3], 768
    $region21: #{tpu_custom_call.1} parent=1 // pred_fallthru
      _
    // Predicated region
    $region22: #{tpu_custom_call.1} parent=1 // pred_check
      _
    $region23: #{tpu_custom_call.1} parent=1 // pred_check_branch
      %54 = sbr.rel (0) target = $region25
    $region24: #{tpu_custom_call.1} parent=1 // pred_region
      %55 = dma.done [#allocation6], 2048
    $region25: #{tpu_custom_call.1} parent=1 // pred_fallthru
      _
    // Predicated region
    $region26: #{tpu_custom_call.1} parent=1 // pred_check
      _
    $region27: #{tpu_custom_call.1} parent=1 // pred_check_branch
      %57 = sbr.rel (0) target = $region29
    $region28: #{tpu_custom_call.1} parent=1 // pred_region
      %58 = dma.done [#allocation6], 2048
    $region29: #{tpu_custom_call.1} parent=1 // pred_fallthru
      _
    %v60 = vld [vmem:[#allocation2] sm:$0xff]
    %v61 = vld [vmem:[#allocation2 + $0x8] sm:$0xff]
    %v62 = vld [vmem:[#allocation2 + $0x10] sm:$0xff]
    %v63 = vld [vmem:[#allocation2 + $0x18] sm:$0xff]
    %v64 = vld [vmem:[#allocation2 + $0x20] sm:$0xff]
    %v65 = vld [vmem:[#allocation2 + $0x28] sm:$0xff]
    %v66 = vld [vmem:[#allocation5] sm:$0xf]
    %v67 = vld [vmem:[#allocation5 + $0x4] sm:$0xf]
    %v68 = vld [vmem:[#allocation5 + $0x8] sm:$0xf]
    %v69 = vld [vmem:[#allocation5 + $0xc] sm:$0xf]
    %v70 = vld [vmem:[#allocation5 + $0x10] sm:$0xf]
    %v71 = vld [vmem:[#allocation5 + $0x14] sm:$0xf]
    %v72 = vld [vmem:[#allocation5 + $0x18] sm:$0xf]
    %v73 = vld [vmem:[#allocation5 + $0x1c] sm:$0xf]
    %v74 = vld [vmem:[#allocation5 + $0x20] sm:$0xf]
    %v75 = vld [vmem:[#allocation5 + $0x24] sm:$0xf]
    %v76 = vld [vmem:[#allocation5 + $0x28] sm:$0xf]
    %v77 = vld [vmem:[#allocation5 + $0x2c] sm:$0xf]
    %v78 = vld [vmem:[#allocation5 + $0x30] sm:$0xf]
    %v79 = vld [vmem:[#allocation5 + $0x34] sm:$0xf]
    %v80 = vld [vmem:[#allocation5 + $0x38] sm:$0xf]
    %v81 = vld [vmem:[#allocation5 + $0x3c] sm:$0xf]
    %v82 = vld [vmem:[#allocation5 + $0x40] sm:$0xf]
    %v83 = vld [vmem:[#allocation5 + $0x44] sm:$0xf]
    %v84 = vld [vmem:[#allocation5 + $0x48] sm:$0xf]
    %v85 = vld [vmem:[#allocation5 + $0x4c] sm:$0xf]
    %v86 = vld [vmem:[#allocation5 + $0x50] sm:$0xf]
    %v87 = vld [vmem:[#allocation5 + $0x54] sm:$0xf]
    %v88 = vld [vmem:[#allocation5 + $0x58] sm:$0xf]
    %v89 = vld [vmem:[#allocation5 + $0x5c] sm:$0xf]
    %v90 = vld [vmem:[#allocation5 + $0x60] sm:$0xf]
    %v91 = vld [vmem:[#allocation5 + $0x64] sm:$0xf]
    %v92 = vld [vmem:[#allocation5 + $0x68] sm:$0xf]
    %v93 = vld [vmem:[#allocation5 + $0x6c] sm:$0xf]
    %v94 = vld [vmem:[#allocation5 + $0x70] sm:$0xf]
    %v95 = vld [vmem:[#allocation5 + $0x74] sm:$0xf]
    %v96 = vld [vmem:[#allocation5 + $0x78] sm:$0xf]
    %v97 = vld [vmem:[#allocation5 + $0x7c] sm:$0xf]
    %v104 = vunpack.c.l.b16 %v60
    %v105 = vunpack.c.h.b16 %v60
    %v106 = vunpack.c.l.b16 %v61
    %v107 = vunpack.c.h.b16 %v61
    %v108 = vunpack.c.l.b16 %v62
    %v109 = vunpack.c.h.b16 %v62
    %v110 = vunpack.c.l.b16 %v63
    %v111 = vunpack.c.h.b16 %v63
    %v112 = vunpack.c.l.b16 %v64
    %v113 = vunpack.c.h.b16 %v64
    %v114 = vunpack.c.l.b16 %v65
    %v115 = vunpack.c.h.b16 %v65
    %v116 = vpack.c.b16 %v106, %v104
    %v117 = vpack.c.b16 %v107, %v105
    %v118 = vpack.c.b16 %v110, %v108
    %v119 = vpack.c.b16 %v111, %v109
    %v120 = vpack.c.b16 %v114, %v112
    %v121 = vpack.c.b16 %v115, %v113
    %v160 = vunpack.c.l.b16 %v66
    %v161 = vunpack.c.l.b16 %v67
    %v162 = vunpack.c.l.b16 %v68
    %v163 = vunpack.c.l.b16 %v69
    %v164 = vunpack.c.l.b16 %v70
    %v165 = vunpack.c.l.b16 %v71
    %v166 = vunpack.c.l.b16 %v72
    %v167 = vunpack.c.l.b16 %v73
    %v168 = vunpack.c.l.b16 %v74
    %v169 = vunpack.c.l.b16 %v75
    %v170 = vunpack.c.l.b16 %v76
    %v171 = vunpack.c.l.b16 %v77
    %v172 = vunpack.c.l.b16 %v78
    %v173 = vunpack.c.l.b16 %v79
    %v174 = vunpack.c.l.b16 %v80
    %v175 = vunpack.c.l.b16 %v81
    %v176 = vunpack.c.l.b16 %v82
    %v177 = vunpack.c.l.b16 %v83
    %v178 = vunpack.c.l.b16 %v84
    %v179 = vunpack.c.l.b16 %v85
    %v180 = vunpack.c.l.b16 %v86
    %v181 = vunpack.c.l.b16 %v87
    %v182 = vunpack.c.l.b16 %v88
    %v183 = vunpack.c.l.b16 %v89
    %v184 = vunpack.c.l.b16 %v90
    %v185 = vunpack.c.l.b16 %v91
    %v186 = vunpack.c.l.b16 %v92
    %v187 = vunpack.c.l.b16 %v93
    %v188 = vunpack.c.l.b16 %v94
    %v189 = vunpack.c.l.b16 %v95
    %v190 = vunpack.c.l.b16 %v96
    %v191 = vunpack.c.l.b16 %v97
    %v192 = vpack.c.b16 %v161, %v160
    %v193 = vpack.c.b16 %v163, %v162
    %v194 = vpack.c.b16 %v165, %v164
    %v195 = vpack.c.b16 %v167, %v166
    %v196 = vpack.c.b16 %v169, %v168
    %v197 = vpack.c.b16 %v171, %v170
    %v198 = vpack.c.b16 %v173, %v172
    %v199 = vpack.c.b16 %v175, %v174
    %v200 = vpack.c.b16 %v177, %v176
    %v201 = vpack.c.b16 %v179, %v178
    %v202 = vpack.c.b16 %v181, %v180
    %v203 = vpack.c.b16 %v183, %v182
    %v204 = vpack.c.b16 %v185, %v184
    %v205 = vpack.c.b16 %v187, %v186
    %v206 = vpack.c.b16 %v189, %v188
    %v207 = vpack.c.b16 %v191, %v190
    %224 = vmatprep.subr.bf16.mxu0 0
    %225 = vmatpush1.bf16.msra.mxu0 %v199
    %226 = vmatprep.subr.bf16.mxu0 0
    %227 = vmatpush1.bf16.msra.mxu0 %v198
    %228 = vmatprep.subr.bf16.mxu0 0
    %229 = vmatpush1.bf16.msra.mxu0 %v197
    %230 = vmatprep.subr.bf16.mxu0 0
    %231 = vmatpush1.bf16.msra.mxu0 %v196
    %232 = vmatprep.subr.bf16.mxu0 0
    %233 = vmatpush1.bf16.msra.mxu0 %v195
    %234 = vmatprep.subr.bf16.mxu0 0
    %235 = vmatpush1.bf16.msra.mxu0 %v194
    %236 = vmatprep.subr.bf16.mxu0 0
    %237 = vmatpush1.bf16.msra.mxu0 %v193
    %238 = vmatprep.subr.bf16.mxu0 0
    %239 = vmatpush1.bf16.msra.mxu0 %v192
    %240 = vmatprep.subr.bf16.mxu0 0
    %241 = vmatpush2.bf16.msra.mxu0 %v207
    %242 = vmatprep.subr.bf16.mxu0 0
    %243 = vmatpush2.bf16.msra.mxu0 %v206
    %244 = vmatprep.subr.bf16.mxu0 0
    %245 = vmatpush2.bf16.msra.mxu0 %v205
    %246 = vmatprep.subr.bf16.mxu0 0
    %247 = vmatpush2.bf16.msra.mxu0 %v204
    %248 = vmatprep.subr.bf16.mxu0 0
    %249 = vmatpush2.bf16.msra.mxu0 %v203
    %250 = vmatprep.subr.bf16.mxu0 0
    %251 = vmatpush2.bf16.msra.mxu0 %v202
    %252 = vmatprep.subr.bf16.mxu0 0
    %253 = vmatpush2.bf16.msra.mxu0 %v201
    %254 = vmatprep.subr.bf16.mxu0 0
    %255 = vmatpush2.bf16.msra.mxu0 %v200
    %256 = vmatprep.mubr.bf16.mxu0 %v117
    %257 = vmatmul.mubr.bf16.gmra.mxu0 %v116
    %v258 = vpop.f32.mrf.mxu0
    %v259 = vadd.f32 0.0, %v258
    %v260 = vpop.f32.mrf.mxu0
    %v261 = vpop.f32.mrf.mxu0
    %v262 = vadd.f32 0.0, %v261
    %v263 = vpop.f32.mrf.mxu0
    %264 = vmatprep.mubr.bf16.mxu0 %v119
    %265 = vmatmul.mubr.bf16.gmra.mxu0 %v118
    %v266 = vpop.f32.mrf.mxu0
    %v267 = vadd.f32 0.0, %v266
    %v268 = vpop.f32.mrf.mxu0
    %v269 = vpop.f32.mrf.mxu0
    %v270 = vadd.f32 0.0, %v269
    %v271 = vpop.f32.mrf.mxu0
    %272 = vmatprep.mubr.bf16.mxu0 %v121
    %273 = vmatmul.mubr.bf16.gmra.mxu0 %v120
    %v274 = vpop.f32.mrf.mxu0
    %v275 = vadd.f32 0.0, %v274
    %v276 = vpop.f32.mrf.mxu0
    %v277 = vpop.f32.mrf.mxu0
    %v278 = vadd.f32 0.0, %v277
    %v279 = vpop.f32.mrf.mxu0
    %280 = vdwg.mxu0
    %v281 = vpack.c.bf16 %v262, %v259
    %v282 = vpack.c.bf16 %v270, %v267
    %v283 = vpack.c.bf16 %v278, %v275
    %v284 = vld [vmem:[#allocation7] sm:$0xff]
    %v285 = vld [vmem:[#allocation7 + $0x8] sm:$0xff]
    %v286 = vld [vmem:[#allocation7 + $0x10] sm:$0xff]
    %v287 = vld [vmem:[#allocation7 + $0x18] sm:$0xff]
    %v288 = vld [vmem:[#allocation7 + $0x20] sm:$0xff]
    %v289 = vld [vmem:[#allocation7 + $0x28] sm:$0xff]
    %v290 = vld [vmem:[#allocation7 + $0x30] sm:$0xff]
    %v291 = vld [vmem:[#allocation7 + $0x38] sm:$0xff]
    %v292 = vld [vmem:[#allocation7 + $0x40] sm:$0xff]
    %v293 = vld [vmem:[#allocation7 + $0x48] sm:$0xff]
    %v294 = vld [vmem:[#allocation7 + $0x50] sm:$0xff]
    %v295 = vld [vmem:[#allocation7 + $0x58] sm:$0xff]
    %v296 = vld [vmem:[#allocation7 + $0x60] sm:$0xff]
    %v297 = vld [vmem:[#allocation7 + $0x68] sm:$0xff]
    %v298 = vld [vmem:[#allocation7 + $0x70] sm:$0xff]
    %v299 = vld [vmem:[#allocation7 + $0x78] sm:$0xff]
    %v300 = vld [vmem:[%s3] sm:$0x3]
    %v302 = vlaneseq
    %v303 = vshrl.u32 %v302, 7
    %v304 = vsub.s32 0, %v303
    %v305 = vrot.slane %v300, %v304
    %v306 = vlaneseq
    %v307 = vshrl.u32 %v306, 7
    %v308 = vsub.s32 1, %v307
    %v309 = vrot.slane %v300, %v308
    %v328 = vunpack.c.l.b16 %v284
    %v329 = vunpack.c.h.b16 %v284
    %v330 = vunpack.c.l.b16 %v285
    %v331 = vunpack.c.h.b16 %v285
    %v332 = vunpack.c.l.b16 %v286
    %v333 = vunpack.c.h.b16 %v286
    %v334 = vunpack.c.l.b16 %v287
    %v335 = vunpack.c.h.b16 %v287
    %v336 = vunpack.c.l.b16 %v288
    %v337 = vunpack.c.h.b16 %v288
    %v338 = vunpack.c.l.b16 %v289
    %v339 = vunpack.c.h.b16 %v289
    %v340 = vunpack.c.l.b16 %v290
    %v341 = vunpack.c.h.b16 %v290
    %v342 = vunpack.c.l.b16 %v291
    %v343 = vunpack.c.h.b16 %v291
    %v344 = vunpack.c.l.b16 %v292
    %v345 = vunpack.c.h.b16 %v292
    %v346 = vunpack.c.l.b16 %v293
    %v347 = vunpack.c.h.b16 %v293
    %v348 = vunpack.c.l.b16 %v294
    %v349 = vunpack.c.h.b16 %v294
    %v350 = vunpack.c.l.b16 %v295
    %v351 = vunpack.c.h.b16 %v295
    %v352 = vunpack.c.l.b16 %v296
    %v353 = vunpack.c.h.b16 %v296
    %v354 = vunpack.c.l.b16 %v297
    %v355 = vunpack.c.h.b16 %v297
    %v356 = vunpack.c.l.b16 %v298
    %v357 = vunpack.c.h.b16 %v298
    %v358 = vunpack.c.l.b16 %v299
    %v359 = vunpack.c.h.b16 %v299
    %v360 = vpack.c.b16 %v330, %v328
    %v361 = vpack.c.b16 %v331, %v329
    %v362 = vpack.c.b16 %v334, %v332
    %v363 = vpack.c.b16 %v335, %v333
    %v364 = vpack.c.b16 %v338, %v336
    %v365 = vpack.c.b16 %v339, %v337
    %v366 = vpack.c.b16 %v342, %v340
    %v367 = vpack.c.b16 %v343, %v341
    %v368 = vpack.c.b16 %v346, %v344
    %v369 = vpack.c.b16 %v347, %v345
    %v370 = vpack.c.b16 %v350, %v348
    %v371 = vpack.c.b16 %v351, %v349
    %v372 = vpack.c.b16 %v354, %v352
    %v373 = vpack.c.b16 %v355, %v353
    %v374 = vpack.c.b16 %v358, %v356
    %v375 = vpack.c.b16 %v359, %v357
    %392 = vmatprep.subr.bf16.mxu0 %v375
    %393 = vmatpush1.bf16.msra.mxu0 %v374
    %394 = vmatprep.subr.bf16.mxu0 %v373
    %395 = vmatpush1.bf16.msra.mxu0 %v372
    %396 = vmatprep.subr.bf16.mxu0 %v371
    %397 = vmatpush1.bf16.msra.mxu0 %v370
    %398 = vmatprep.subr.bf16.mxu0 %v369
    %399 = vmatpush1.bf16.msra.mxu0 %v368
    %400 = vmatprep.subr.bf16.mxu0 %v367
    %401 = vmatpush1.bf16.msra.mxu0 %v366
    %402 = vmatprep.subr.bf16.mxu0 %v365
    %403 = vmatpush1.bf16.msra.mxu0 %v364
    %404 = vmatprep.subr.bf16.mxu0 %v363
    %405 = vmatpush1.bf16.msra.mxu0 %v362
    %406 = vmatprep.subr.bf16.mxu0 %v361
    %407 = vmatpush1.bf16.msra.mxu0 %v360
    %408 = vmatprep.subr.bf16.mxu0 0
    %409 = vmatpush2.bf16.msra.mxu0 0
    %410 = vmatprep.subr.bf16.mxu0 0
    %411 = vmatpush2.bf16.msra.mxu0 0
    %412 = vmatprep.subr.bf16.mxu0 0
    %413 = vmatpush2.bf16.msra.mxu0 0
    %414 = vmatprep.subr.bf16.mxu0 0
    %415 = vmatpush2.bf16.msra.mxu0 0
    %416 = vmatprep.subr.bf16.mxu0 0
    %417 = vmatpush2.bf16.msra.mxu0 0
    %418 = vmatprep.subr.bf16.mxu0 0
    %419 = vmatpush2.bf16.msra.mxu0 0
    %420 = vmatprep.subr.bf16.mxu0 0
    %421 = vmatpush2.bf16.msra.mxu0 0
    %422 = vmatprep.subr.bf16.mxu0 0
    %423 = vmatpush2.bf16.msra.mxu0 0
    %424 = vmatprep.mubr.bf16.mxu0 0
    %425 = vmatmul.mubr.bf16.gmra.mxu0 %v281
    %v426 = vpop.f32.mrf.mxu0
    %v427 = vadd.f32 %v305, %v426
    %v428 = vpop.f32.mrf.mxu0
    %v429 = vpop.f32.mrf.mxu0
    %v430 = vadd.f32 %v305, %v429
    %v431 = vpop.f32.mrf.mxu0
    %432 = vmatprep.mubr.bf16.mxu0 0
    %433 = vmatmul.mubr.bf16.gmra.mxu0 %v282
    %v434 = vpop.f32.mrf.mxu0
    %v435 = vadd.f32 %v305, %v434
    %v436 = vpop.f32.mrf.mxu0
    %v437 = vpop.f32.mrf.mxu0
    %v438 = vadd.f32 %v305, %v437
    %v439 = vpop.f32.mrf.mxu0
    %440 = vmatprep.mubr.bf16.mxu0 0
    %441 = vmatmul.mubr.bf16.gmra.mxu0 %v283
    %v442 = vpop.f32.mrf.mxu0
    %v443 = vpop.f32.mrf.mxu0
    %v444 = vadd.f32 %v309, %v443
    %v445 = vpop.f32.mrf.mxu0
    %v446 = vpop.f32.mrf.mxu0
    %v447 = vadd.f32 %v309, %v446
    %448 = vdwg.mxu0
    %v449 = vmax.f32 %v427, 0.0
    %v450 = vmax.f32 %v430, 0.0
    %v451 = vmax.f32 %v435, 0.0
    %v452 = vmax.f32 %v438, 0.0
    %v453 = vmax.f32 %v444, 0.0
    %v454 = vmax.f32 %v447, 0.0
    %v455 = vadd.f32 %v259, %v449
    %v456 = vadd.f32 %v262, %v450
    %v457 = vadd.f32 %v267, %v451
    %v458 = vadd.f32 %v270, %v452
    %v459 = vadd.f32 %v275, %v453
    %v460 = vadd.f32 %v278, %v454
    %v461 = vadd.f32 %v457, %v459
    %v462 = vadd.f32 %v458, %v460
    %v463 = vmul.f32 %v461, %v461
    %v464 = vmul.f32 %v462, %v462
    %465 = vadd.xlane.f32.xlu0 %v463
    %v466 = vpop.xlane.xlu0 %465
    %467 = vadd.xlane.f32.xlu0 %v464
    %v468 = vpop.xlane.xlu0 %467
    %v469 = vmax.f32 %v466, 1e-24
    %v470 = vmax.f32 %v468, 1e-24
    %v471 = vrsqrt.pop %v469
    %v472 = vrsqrt.pop %v470
    %v473 = vmul.f32 %v461, %v471
    %v474 = vmul.f32 %v462, %v472
    %v475 = vmul.f32 %v455, %v455
    %v476 = vmul.f32 %v456, %v456
    %477 = vadd.xlane.f32.xlu0 %v475
    %v478 = vpop.xlane.xlu0 %477
    %479 = vadd.xlane.f32.xlu0 %v476
    %v480 = vpop.xlane.xlu0 %479
    %v481 = vmax.f32 %v478, 1e-24
    %v482 = vmax.f32 %v480, 1e-24
    %v483 = vrsqrt.pop %v481
    %v484 = vrsqrt.pop %v482
    %v485 = vmul.f32 %v455, %v483
    %v486 = vmul.f32 %v456, %v484
    %v487 = vmul.f32 %v459, %v459
    %v488 = vmul.f32 %v460, %v460
    %489 = vadd.xlane.f32.xlu0 %v487
    %v490 = vpop.xlane.xlu0 %489
    %491 = vadd.xlane.f32.xlu0 %v488
    %v492 = vpop.xlane.xlu0 %491
    %v493 = vmax.f32 %v490, 1e-24
    %v494 = vmax.f32 %v492, 1e-24
    %v495 = vrsqrt.pop %v493
    %v496 = vrsqrt.pop %v494
    %v497 = vmul.f32 %v459, %v495
    %v498 = vmul.f32 %v460, %v496
    %v499 = vpack.c.bf16 %v498, %v497
    %v500 = vpack.c.bf16 0.0, 0.0
    %v501 = vpack.c.bf16 %v486, %v485
    %502 = vmatprep.subr.bf16.mxu0 0
    %503 = vmatpush1.bf16.xpose.msra.mxu0 %v500
    %504 = vmatprep.subr.bf16.mxu0 0
    %505 = vmatpush1.bf16.xpose.msra.mxu0 %v500
    %506 = vmatprep.subr.bf16.mxu0 0
    %507 = vmatpush1.bf16.xpose.msra.mxu0 %v500
    %508 = vmatprep.subr.bf16.mxu0 0
    %509 = vmatpush1.bf16.xpose.msra.mxu0 %v500
    %510 = vmatprep.subr.bf16.mxu0 0
    %511 = vmatpush1.bf16.xpose.msra.mxu0 %v500
    %512 = vmatprep.subr.bf16.mxu0 0
    %513 = vmatpush1.bf16.xpose.msra.mxu0 %v500
    %514 = vmatprep.subr.bf16.mxu0 0
    %515 = vmatpush1.bf16.xpose.msra.mxu0 %v500
    %516 = vmatprep.subr.bf16.mxu0 0
    %517 = vmatpush1.bf16.xpose.msra.mxu0 %v499
    %518 = vmatprep.subr.bf16.mxu0 0
    %519 = vmatpush2.bf16.xpose.msra.mxu0 0
    %520 = vmatprep.subr.bf16.mxu0 0
    %521 = vmatpush2.bf16.xpose.msra.mxu0 0
    %522 = vmatprep.subr.bf16.mxu0 0
    %523 = vmatpush2.bf16.xpose.msra.mxu0 0
    %524 = vmatprep.subr.bf16.mxu0 0
    %525 = vmatpush2.bf16.xpose.msra.mxu0 0
    %526 = vmatprep.subr.bf16.mxu0 0
    %527 = vmatpush2.bf16.xpose.msra.mxu0 0
    %528 = vmatprep.subr.bf16.mxu0 0
    %529 = vmatpush2.bf16.xpose.msra.mxu0 0
    %530 = vmatprep.subr.bf16.mxu0 0
    %531 = vmatpush2.bf16.xpose.msra.mxu0 0
    %532 = vmatprep.subr.bf16.mxu0 0
    %533 = vmatpush2.bf16.xpose.msra.mxu0 0
    %534 = vmatprep.mubr.bf16.mxu0 0
    %535 = vmatmul.mubr.bf16.gmra.mxu0 %v501
    %v536 = vpop.f32.mrf.mxu0
    %v537 = vadd.f32 0.0, %v536
    %v538 = vpop.f32.mrf.mxu0
    %v539 = vpop.f32.mrf.mxu0
    %v540 = vadd.f32 0.0, %v539
    %v541 = vpop.f32.mrf.mxu0
    %542 = vdwg.mxu0
    %543 = vst [vmem:[#allocation8] sm:$0xff] %v537
    %544 = vst [vmem:[#allocation8 + $0x8] sm:$0xff] %v540
    %v545 = vpack.c.bf16 %v474, %v473
    %546 = vmatprep.subr.bf16.mxu0 0
    %547 = vmatpush1.bf16.xpose.msra.mxu0 %v500
    %548 = vmatprep.subr.bf16.mxu0 0
    %549 = vmatpush1.bf16.xpose.msra.mxu0 %v500
    %550 = vmatprep.subr.bf16.mxu0 0
    %551 = vmatpush1.bf16.xpose.msra.mxu0 %v500
    %552 = vmatprep.subr.bf16.mxu0 0
    %553 = vmatpush1.bf16.xpose.msra.mxu0 %v500
    %554 = vmatprep.subr.bf16.mxu0 0
    %555 = vmatpush1.bf16.xpose.msra.mxu0 %v500
    %556 = vmatprep.subr.bf16.mxu0 0
    %557 = vmatpush1.bf16.xpose.msra.mxu0 %v500
    %558 = vmatprep.subr.bf16.mxu0 0
    %559 = vmatpush1.bf16.xpose.msra.mxu0 %v500
    %560 = vmatprep.subr.bf16.mxu0 0
    %561 = vmatpush1.bf16.xpose.msra.mxu0 %v499
    %562 = vmatprep.subr.bf16.mxu0 0
    %563 = vmatpush2.bf16.xpose.msra.mxu0 0
    %564 = vmatprep.subr.bf16.mxu0 0
    %565 = vmatpush2.bf16.xpose.msra.mxu0 0
    %566 = vmatprep.subr.bf16.mxu0 0
    %567 = vmatpush2.bf16.xpose.msra.mxu0 0
    %568 = vmatprep.subr.bf16.mxu0 0
    %569 = vmatpush2.bf16.xpose.msra.mxu0 0
    %570 = vmatprep.subr.bf16.mxu0 0
    %571 = vmatpush2.bf16.xpose.msra.mxu0 0
    %572 = vmatprep.subr.bf16.mxu0 0
    %573 = vmatpush2.bf16.xpose.msra.mxu0 0
    %574 = vmatprep.subr.bf16.mxu0 0
    %575 = vmatpush2.bf16.xpose.msra.mxu0 0
    %576 = vmatprep.subr.bf16.mxu0 0
    %577 = vmatpush2.bf16.xpose.msra.mxu0 0
    %578 = vmatprep.mubr.bf16.mxu0 0
    %579 = vmatmul.mubr.bf16.gmra.mxu0 %v545
    %v580 = vpop.f32.mrf.mxu0
    %v581 = vadd.f32 0.0, %v580
    %v582 = vpop.f32.mrf.mxu0
    %v583 = vpop.f32.mrf.mxu0
    %v584 = vadd.f32 0.0, %v583
    %v585 = vpop.f32.mrf.mxu0
    %586 = vdwg.mxu0
    %587 = vst [vmem:[#allocation8 + $0x10] sm:$0xff] %v581
    %588 = vst [vmem:[#allocation8 + $0x18] sm:$0xff] %v584
    // Predicated region
    $region30: #{tpu_custom_call.1} parent=1 // pred_check
      _
    $region31: #{tpu_custom_call.1} parent=1 // pred_check_branch
      %590 = sbr.rel (0) target = $region33
    $region32: #{tpu_custom_call.1} parent=1 // pred_region
      %s592 = ssub.s32 512, 512
      %593 = vsyncadd [#allocation4], %s592
      %s594 = sshll.u32 [#allocation8], 4
      %s595 = int_to_ptr.vmem [resolvable:$true] %s594
      %600 = dma.vmem_to_hbm [thread:$0]  %s595, 512, %s4, [#allocation4], 128, 128, 8
    $region33: #{tpu_custom_call.1} parent=1 // pred_fallthru
      _
    // Predicated region
    $region34: #{tpu_custom_call.1} parent=1 // pred_check
      _
    $region35: #{tpu_custom_call.1} parent=1 // pred_check_branch
      %602 = sbr.rel (0) target = $region37
    $region36: #{tpu_custom_call.1} parent=1 // pred_region
      %603 = dma.done [#allocation4], 512
    $region37: #{tpu_custom_call.1} parent=1 // pred_fallthru
      _
    %604 = vsyncpa [#allocation3], 1
    %605 = vsyncpa [#allocation6], 1
    %606 = vsyncpa [#allocation4], 1

</llo_original>
